<compile_context>
chip_gen: v7x
topology: tpu7x:2x2x1
jax: 0.10.0
libtpu: 0.0.40
codegen_flags: <defaults>
</compile_context>

<pallas_src>
import functools
import math

import jax
import jax.numpy as jnp
from jax import lax
from jax.experimental import pallas as pl
from jax.experimental.pallas import tpu as pltpu


def _round_up(a, b):
    return (a + b - 1) // b * b


# ----------------------------- kernels -------------------------------------


def _kernel_resident(x_ref, w_ref, b_ref, g_ref, bt_ref, o_ref, *, eps, inv_e):
    """Weight VMEM-resident path (1-D grid over row tiles).

    x_ref : (TM, Kp)   bf16/f32 input rows tile
    w_ref : (Kp, Ep)   projection weight (constant index_map -> resident)
    b_ref : (1, Ep)    projection bias (f32, zero-padded)
    g_ref : (1, Ep)    LayerNorm gamma (f32, zero-padded)
    bt_ref: (1, Ep)    LayerNorm beta  (f32, zero-padded)
    o_ref : (TM, Ep)   output tile
    """
    y = jnp.dot(x_ref[...], w_ref[...], preferred_element_type=jnp.float32)
    y = y + b_ref[...]
    # One-pass statistics over the real E columns (padded columns are exactly
    # zero, so the sums are already over real data; divide by real E).
    mean = jnp.sum(y, axis=-1, keepdims=True) * inv_e
    msq = jnp.sum(y * y, axis=-1, keepdims=True) * inv_e
    var = jnp.maximum(msq - mean * mean, 0.0)
    y_hat = (y - mean) * lax.rsqrt(var + eps)
    o_ref[...] = (y_hat * g_ref[...] + bt_ref[...]).astype(o_ref.dtype)


def _kernel_split_k(x_ref, w_ref, b_ref, g_ref, bt_ref, o_ref, acc_ref, *, eps, inv_e):
    """Fallback for very large K*E: contraction split on trailing grid axis."""
    k = pl.program_id(1)
    p = jnp.dot(x_ref[...], w_ref[...], preferred_element_type=jnp.float32)

    @pl.when(k == 0)
    def _():
        acc_ref[...] = p + b_ref[...]          # init with first product + bias

    @pl.when(k > 0)
    def _():
        acc_ref[...] += p

    @pl.when(k == pl.num_programs(1) - 1)
    def _():
        y = acc_ref[...]
        mean = jnp.sum(y, axis=-1, keepdims=True) * inv_e
        msq = jnp.sum(y * y, axis=-1, keepdims=True) * inv_e
        var = jnp.maximum(msq - mean * mean, 0.0)
        y_hat = (y - mean) * lax.rsqrt(var + eps)
        o_ref[...] = (y_hat * g_ref[...] + bt_ref[...]).astype(o_ref.dtype)


# ----------------------------- wrapper --------------------------------------

# Conservative soft budget for the double-buffered working set; safe against
# v7x (64 MiB physical VMEM, 32 MiB default scoped) and trivially safe on
# v5e/v6e (128 MiB).
_VMEM_SOFT_BUDGET = 32 * 1024 * 1024


def activation_map_tokenizer(x, weight, bias, gamma, beta, *, eps=1e-5,
                             cast_inputs_to_bf16=True):
    """Fused Linear(H*W -> E) + LayerNorm(E).

    x      : (B, C, H, W)
    weight : (E, H*W)   -- torch nn.Linear layout
    bias   : (E,)
    gamma  : (E,)       -- LayerNorm weight
    beta   : (E,)       -- LayerNorm bias
    returns: (B, C, E) in x.dtype
    """
    B, C, H, W = x.shape
    K = H * W
    E, K_w = weight.shape
    assert K_w == K, f"weight must be (E, H*W)=(E, {K}), got {weight.shape}"
    M = B * C
    out_dtype = x.dtype

    in_dtype = jnp.bfloat16 if cast_inputs_to_bf16 else x.dtype
    in_bytes = jnp.dtype(in_dtype).itemsize
    out_bytes = jnp.dtype(out_dtype).itemsize

    x2 = x.reshape(M, K).astype(in_dtype)
    w = weight.T.astype(in_dtype)                       # (K, E)
    b = bias.reshape(1, E).astype(jnp.float32)
    g = gamma.reshape(1, E).astype(jnp.float32)
    bt = beta.reshape(1, E).astype(jnp.float32)

    # --- tiling -------------------------------------------------------------
    row_align = 16 if in_dtype == jnp.bfloat16 else 8   # sublane packing
    E_pad = _round_up(E, 128)                           # lane-dense stores
    K_128 = _round_up(K, 128)

    # Row tile: big (512) to amortise per-step overhead; aligned to sublanes.
    TM = min(512, _round_up(M, row_align))
    # v7x has 2 TensorCores on the "parallel" row axis: avoid a single block.
    if _round_up(M, TM) // TM < 2 and TM > row_align:
        tm_half = _round_up(-(-M // 2), row_align)
        if tm_half < TM:
            TM = tm_half

    weight_bytes = 2 * K_128 * E_pad * in_bytes         # conservatively 2-buffered
    resident = weight_bytes <= _VMEM_SOFT_BUDGET // 2

    if resident:
        TK = K_128

        def ws(tm):
            return (2 * tm * TK * in_bytes              # x tiles (double buffer)
                    + weight_bytes                      # resident weight
                    + 2 * tm * E_pad * out_bytes        # output tiles
                    + 6 * E_pad * 4)                    # bias/gamma/beta
    else:
        TK = 512 if K_128 >= 512 else K_128

        def ws(tm):
            return (2 * tm * TK * in_bytes
                    + 2 * TK * E_pad * in_bytes
                    + 2 * tm * E_pad * out_bytes
                    + tm * E_pad * 4                    # f32 accumulator
                    + 6 * E_pad * 4)

    while ws(TM) > _VMEM_SOFT_BUDGET and TM > row_align:
        TM = max(row_align, _round_up(TM // 2, row_align))

    M_pad = _round_up(M, TM)
    K_pad = _round_up(K, TK)

    # Zero padding: extra K columns/rows contribute 0 to the dot; extra rows
    # and extra E columns are sliced off below. Padded gamma/beta are zero.
    x2p = jnp.pad(x2, ((0, M_pad - M), (0, K_pad - K)))
    wp = jnp.pad(w, ((0, K_pad - K), (0, E_pad - E)))
    bp = jnp.pad(b, ((0, 0), (0, E_pad - E)))
    gp = jnp.pad(g, ((0, 0), (0, E_pad - E)))
    btp = jnp.pad(bt, ((0, 0), (0, E_pad - E)))

    inv_e = 1.0 / float(E)

    if resident:
        grid = (M_pad // TM,)
        in_specs = [
            pl.BlockSpec((TM, K_pad), lambda i: (i, 0)),       # x rows tile
            pl.BlockSpec((K_pad, E_pad), lambda i: (0, 0)),    # weight (resident)
            pl.BlockSpec((1, E_pad), lambda i: (0, 0)),        # bias
            pl.BlockSpec((1, E_pad), lambda i: (0, 0)),        # gamma
            pl.BlockSpec((1, E_pad), lambda i: (0, 0)),        # beta
        ]
        out_specs = pl.BlockSpec((TM, E_pad), lambda i: (i, 0))
        scratch_shapes = ()
        kernel = functools.partial(_kernel_resident, eps=eps, inv_e=inv_e)
        dims = ("parallel",)
    else:
        grid = (M_pad // TM, K_pad // TK)
        in_specs = [
            pl.BlockSpec((TM, TK), lambda i, k: (i, k)),
            pl.BlockSpec((TK, E_pad), lambda i, k: (k, 0)),
            pl.BlockSpec((1, E_pad), lambda i, k: (0, 0)),
            pl.BlockSpec((1, E_pad), lambda i, k: (0, 0)),
            pl.BlockSpec((1, E_pad), lambda i, k: (0, 0)),
        ]
        out_specs = pl.BlockSpec((TM, E_pad), lambda i, k: (i, 0))
        scratch_shapes = (pltpu.VMEM((TM, E_pad), jnp.float32),)
        kernel = functools.partial(_kernel_split_k, eps=eps, inv_e=inv_e)
        dims = ("parallel", "arbitrary")

    needed = ws(TM)
    vmem_limit = int(min(max(needed * 3 // 2 + (4 << 20), 16 << 20), 64 << 20))

    row_blocks = M_pad // TM
    w_reads = 1 if resident else row_blocks
    cost = pl.CostEstimate(
        flops=2 * M * K * E,
        transcendentals=M,                               # one rsqrt per row
        bytes_accessed=(M * K * in_bytes
                        + w_reads * K * E * in_bytes
                        + M * E * out_bytes
                        + 3 * E * 4),
    )

    out = pl.pallas_call(
        kernel,
        out_shape=jax.ShapeDtypeStruct((M_pad, E_pad), out_dtype),
        grid_spec=pltpu.PrefetchScalarGridSpec(
            num_scalar_prefetch=0,
            grid=grid,
            in_specs=in_specs,
            out_specs=out_specs,
            scratch_shapes=scratch_shapes,
        ),
        compiler_params=pltpu.CompilerParams(
            dimension_semantics=dims,
            vmem_limit_bytes=vmem_limit,
        ),
        cost_estimate=cost,
    )(x2p, wp, bp, gp, btp)

    return out[:M, :E].reshape(B, C, E)


# ----------------------------- demo / check ---------------------------------

if __name__ == "__main__":
    # Shapes implied by the module: x is (B, C, H, W); tokens are (B, C, E).
    B, C, H, W, E = 2, 4, 16, 16, 32
    eps = 1e-5

    key = jax.random.PRNGKey(0)
    kx, kw, kb, kg, kbt = jax.random.split(key, 5)

    x = jax.random.normal(kx, (B, C, H, W), dtype=jnp.float32)

    # Parameters in torch nn.Linear / nn.LayerNorm layout.
    bound = 1.0 / math.sqrt(H * W)
    weight = jax.random.uniform(kw, (E, H * W), jnp.float32, -bound, bound)
    bias = jax.random.uniform(kb, (E,), jnp.float32, -bound, bound)
    gamma = 1.0 + 0.1 * jax.random.normal(kg, (E,), jnp.float32)
    beta = 0.1 * jax.random.normal(kbt, (E,), jnp.float32)

    out = activation_map_tokenizer(x, weight, bias, gamma, beta, eps=eps)
    out = jax.block_until_ready(out)

    # Pure-JAX reference (same math as the torch forward), full f32 precision.
    xf = x.reshape(B, C, H * W)
    y = jnp.einsum("bck,ke->bce", xf, weight.T,
                   precision=lax.Precision.HIGHEST) + bias
    mean = y.mean(-1, keepdims=True)
    var = jnp.square(y - mean).mean(-1, keepdims=True)
    ref = (y - mean) / jnp.sqrt(var + eps) * gamma + beta

    assert out.shape == (B, C, E)
    # Tolerance is loose because the kernel feeds bf16 operands to the MXU
    # (equivalent to the default-precision f32 matmul path); LayerNorm outputs
    # are O(1), so any structural bug would be off by orders of magnitude.
    err = float(jnp.max(jnp.abs(out - ref)))
    assert jnp.allclose(out, ref, atol=3e-2, rtol=3e-2), err

    print("KERNEL_OK")
</pallas_src>

<mosaic_0001>
module attributes {stable_mosaic.version = 11 : i64} {
  func.func @_kernel_resident(%arg0: i32, %arg1: memref<16x256xbf16, #tpu.memory_space<vmem>>, %arg2: memref<256x128xbf16, #tpu.memory_space<vmem>>, %arg3: memref<1x128xf32, #tpu.memory_space<vmem>>, %arg4: memref<1x128xf32, #tpu.memory_space<vmem>>, %arg5: memref<1x128xf32, #tpu.memory_space<vmem>>, %arg6: memref<16x128xf32, #tpu.memory_space<vmem>>) attributes {dimension_semantics = [#tpu.dimension_semantics<parallel>], iteration_bounds = array<i64: 1>, scalar_prefetch = 0 : i64, scratch_operands = 0 : i64, tpu.core_type = #tpu.core_type<tc>, window_params = [{transform_indices = @transform_0, window_bounds = array<i64: 16, 256>}, {pipeline_mode = #tpu.pipeline_mode<synchronous>, transform_indices = @transform_1, window_bounds = array<i64: 256, 128>}, {pipeline_mode = #tpu.pipeline_mode<synchronous>, transform_indices = @transform_2, window_bounds = array<i64: 1, 128>}, {pipeline_mode = #tpu.pipeline_mode<synchronous>, transform_indices = @transform_3, window_bounds = array<i64: 1, 128>}, {pipeline_mode = #tpu.pipeline_mode<synchronous>, transform_indices = @transform_4, window_bounds = array<i64: 1, 128>}, {transform_indices = @transform_5, window_bounds = array<i64: 16, 128>}]} {
    %c0 = arith.constant 0 : index
    %c0_0 = arith.constant 0 : index
    %0 = vector.load %arg1[%c0, %c0_0] : memref<16x256xbf16, #tpu.memory_space<vmem>>, vector<16x256xbf16>
    %c0_1 = arith.constant 0 : index
    %c0_2 = arith.constant 0 : index
    %1 = vector.load %arg2[%c0_1, %c0_2] : memref<256x128xbf16, #tpu.memory_space<vmem>>, vector<256x128xbf16>
    %cst = arith.constant dense<0.000000e+00> : vector<16x128xf32>
    %2 = tpu.matmul %0, %1, %cst {dimension_numbers = #tpu.dot_dimension_numbers<[1], [0], [0], [1], [0, 0, 1, 1], [], []>} : vector<16x256xbf16>, vector<256x128xbf16>, vector<16x128xf32> -> vector<16x128xf32>
    %c0_3 = arith.constant 0 : index
    %c0_4 = arith.constant 0 : index
    %3 = vector.load %arg3[%c0_3, %c0_4] : memref<1x128xf32, #tpu.memory_space<vmem>>, vector<1x128xf32>
    %4 = vector.broadcast %3 : vector<1x128xf32> to vector<16x128xf32>
    %5 = arith.addf %2, %4 : vector<16x128xf32>
    %cst_5 = arith.constant dense<0.000000e+00> : vector<16xf32>
    %6 = vector.multi_reduction <add>, %5, %cst_5 [1] : vector<16x128xf32> to vector<16xf32>
    %7 = vector.shape_cast %6 : vector<16xf32> to vector<16x1xf32>
    %cst_6 = arith.constant 3.125000e-02 : f32
    %8 = vector.broadcast %cst_6 : f32 to vector<16x1xf32>
    %9 = arith.mulf %7, %8 : vector<16x1xf32>
    %10 = arith.mulf %5, %5 : vector<16x128xf32>
    %cst_7 = arith.constant dense<0.000000e+00> : vector<16xf32>
    %11 = vector.multi_reduction <add>, %10, %cst_7 [1] : vector<16x128xf32> to vector<16xf32>
    %12 = vector.shape_cast %11 : vector<16xf32> to vector<16x1xf32>
    %cst_8 = arith.constant 3.125000e-02 : f32
    %13 = vector.broadcast %cst_8 : f32 to vector<16x1xf32>
    %14 = arith.mulf %12, %13 : vector<16x1xf32>
    %15 = arith.mulf %9, %9 : vector<16x1xf32>
    %16 = arith.subf %14, %15 : vector<16x1xf32>
    %cst_9 = arith.constant 0.000000e+00 : f32
    %17 = vector.broadcast %cst_9 : f32 to vector<16x1xf32>
    %18 = arith.maximumf %16, %17 : vector<16x1xf32>
    %19 = vector.broadcast %9 : vector<16x1xf32> to vector<16x128xf32>
    %20 = arith.subf %5, %19 : vector<16x128xf32>
    %cst_10 = arith.constant 9.99999974E-6 : f32
    %21 = vector.broadcast %cst_10 : f32 to vector<16x1xf32>
    %22 = arith.addf %18, %21 : vector<16x1xf32>
    %23 = math.rsqrt %22 : vector<16x1xf32>
    %24 = vector.broadcast %23 : vector<16x1xf32> to vector<16x128xf32>
    %25 = arith.mulf %20, %24 : vector<16x128xf32>
    %c0_11 = arith.constant 0 : index
    %c0_12 = arith.constant 0 : index
    %26 = vector.load %arg4[%c0_11, %c0_12] : memref<1x128xf32, #tpu.memory_space<vmem>>, vector<1x128xf32>
    %27 = vector.broadcast %26 : vector<1x128xf32> to vector<16x128xf32>
    %28 = arith.mulf %25, %27 : vector<16x128xf32>
    %c0_13 = arith.constant 0 : index
    %c0_14 = arith.constant 0 : index
    %29 = vector.load %arg5[%c0_13, %c0_14] : memref<1x128xf32, #tpu.memory_space<vmem>>, vector<1x128xf32>
    %30 = vector.broadcast %29 : vector<1x128xf32> to vector<16x128xf32>
    %31 = arith.addf %28, %30 : vector<16x128xf32>
    %c0_15 = arith.constant 0 : index
    %c0_16 = arith.constant 0 : index
    %32 = vector.load %arg6[%c0_15, %c0_16] : memref<16x128xf32, #tpu.memory_space<vmem>>, vector<16x128xf32>
    tpu.vector_store %arg6[%c0_15, %c0_16], %31 {strides = array<i32>} : memref<16x128xf32, #tpu.memory_space<vmem>>, vector<16x128xf32>,
    return
  }
  func.func @transform_0(%arg0: i32) -> (i32, i32) {
    %c0_i32 = arith.constant 0 : i32
    %c0_i32_0 = arith.constant 0 : i32
    return %arg0, %c0_i32 : i32, i32
  }
  func.func @transform_1(%arg0: i32) -> (i32, i32) {
    %c0_i32 = arith.constant 0 : i32
    %c0_i32_0 = arith.constant 0 : i32
    %c0_i32_1 = arith.constant 0 : i32
    return %c0_i32, %c0_i32_0 : i32, i32
  }
  func.func @transform_2(%arg0: i32) -> (i32, i32) {
    %c0_i32 = arith.constant 0 : i32
    %c0_i32_0 = arith.constant 0 : i32
    %c0_i32_1 = arith.constant 0 : i32
    return %c0_i32, %c0_i32_0 : i32, i32
  }
  func.func @transform_3(%arg0: i32) -> (i32, i32) {
    %c0_i32 = arith.constant 0 : i32
    %c0_i32_0 = arith.constant 0 : i32
    %c0_i32_1 = arith.constant 0 : i32
    return %c0_i32, %c0_i32_0 : i32, i32
  }
  func.func @transform_4(%arg0: i32) -> (i32, i32) {
    %c0_i32 = arith.constant 0 : i32
    %c0_i32_0 = arith.constant 0 : i32
    %c0_i32_1 = arith.constant 0 : i32
    return %c0_i32, %c0_i32_0 : i32, i32
  }
  func.func @transform_5(%arg0: i32) -> (i32, i32) {
    %c0_i32 = arith.constant 0 : i32
    %c0_i32_0 = arith.constant 0 : i32
    return %arg0, %c0_i32 : i32, i32
  }
}

</mosaic_0001>

<llo_original>
// kernel: tpu_custom_call.1
$region0: #{tpu_custom_call.1}
  #allocation0 [shape = 'u32[]', space=smem, size = 0x4, offset = 0x4, fixed_abs, tag = 'smem constant byte address 0x4 - core index']
  #allocation1 [shape = 'u32[144,128]{1,0:T(1,128)}', space=vmem, size = 0x12000, scoped, tag = 'internal scratch']
  %s0 = inlined_call_operand.hbm [shape: bf16[16,256], index: 0, kind: input, shape index: {}]
  %s1 = inlined_call_operand.hbm [shape: bf16[256,128], index: 1, kind: input, shape index: {}]
  %s2 = inlined_call_operand.vmem [shape: f32[1,128], index: 2, kind: input, shape index: {}]
  %s3 = inlined_call_operand.vmem [shape: f32[1,128], index: 3, kind: input, shape index: {}]
  %s4 = inlined_call_operand.vmem [shape: f32[1,128], index: 4, kind: input, shape index: {}]
  %s5 = inlined_call_operand.hbm [shape: f32[16,128], index: 5, kind: output, shape index: {}]
  %s6 = sld [smem:[#allocation0]]
  $region38: #{tpu_custom_call.1} parent=0
    _
  %s8 = ssub.s32 1, %s6
  %s9 = scalar_select 0, %s8, %s6
  $region1: #{tpu_custom_call.1} parent=0
    #allocation2 [shape = 'u8[8192]{0}', space=vmem, size = 0x2000, scoped, tag = 'input window, operand 0, single buffered']
    #allocation3 [shape = 's32[1]{0}', space=sflag, size = 0x4, scoped, tag = 'scoped memory for tpu_custom_call.1']
    #allocation4 [shape = 's32[1]{0}', space=sflag, size = 0x4, scoped, tag = 'scoped memory for tpu_custom_call.1']
    #allocation5 [shape = 'u8[65536]{0}', space=vmem, size = 0x10000, scoped, tag = 'input window, operand 1, single buffered']
    #allocation6 [shape = 's32[1]{0}', space=sflag, size = 0x4, scoped, tag = 'scoped memory for tpu_custom_call.1']
    #allocation7 [shape = 'u8[8192]{0}', space=vmem, size = 0x2000, scoped, tag = 'output window, operand 0, single buffered']
    %10 = vsyncpa [#allocation3], 0
    %11 = vsyncpa [#allocation6], 0
    %12 = vsyncpa [#allocation4], 0
    // Predicated region
    $region2: #{tpu_custom_call.1} parent=1 // pred_check
      _
    $region3: #{tpu_custom_call.1} parent=1 // pred_check_branch
      %14 = sbr.rel (0) target = $region5
    $region4: #{tpu_custom_call.1} parent=1 // pred_region
      %s16 = ssub.s32 256, 256
      %17 = vsyncadd [#allocation3], %s16
      %s18 = sshll.u32 [#allocation2], 4
      %s19 = int_to_ptr.vmem [resolvable:$true] %s18
      %24 = dma.hbm_to_vmem [thread:$0]  %s0, 256, %s19, [#allocation3], 128, 128, 8
    $region5: #{tpu_custom_call.1} parent=1 // pred_fallthru
      _
    // Predicated region
    $region6: #{tpu_custom_call.1} parent=1 // pred_check
      _
    $region7: #{tpu_custom_call.1} parent=1 // pred_check_branch
      %26 = sbr.rel (0) target = $region9
    $region8: #{tpu_custom_call.1} parent=1 // pred_region
      %s28 = ssub.s32 2048, 2048
      %29 = vsyncadd [#allocation6], %s28
      %s30 = sshll.u32 [#allocation5], 4
      %s31 = int_to_ptr.vmem [resolvable:$true] %s30
      %36 = dma.hbm_to_vmem [thread:$0]  %s1, 2048, %s31, [#allocation6], 64, 64, 4
    $region9: #{tpu_custom_call.1} parent=1 // pred_fallthru
      _
    // Predicated region
    $region10: #{tpu_custom_call.1} parent=1 // pred_check
      _
    $region11: #{tpu_custom_call.1} parent=1 // pred_check_branch
      %38 = sbr.rel (0) target = $region13
    $region12: #{tpu_custom_call.1} parent=1 // pred_region
      _
    $region13: #{tpu_custom_call.1} parent=1 // pred_fallthru
      _
    // Predicated region
    $region14: #{tpu_custom_call.1} parent=1 // pred_check
      _
    $region15: #{tpu_custom_call.1} parent=1 // pred_check_branch
      %40 = sbr.rel (0) target = $region17
    $region16: #{tpu_custom_call.1} parent=1 // pred_region
      _
    $region17: #{tpu_custom_call.1} parent=1 // pred_fallthru
      _
    // Predicated region
    $region18: #{tpu_custom_call.1} parent=1 // pred_check
      _
    $region19: #{tpu_custom_call.1} parent=1 // pred_check_branch
      %42 = sbr.rel (0) target = $region21
    $region20: #{tpu_custom_call.1} parent=1 // pred_region
      _
    $region21: #{tpu_custom_call.1} parent=1 // pred_fallthru
      _
    // Predicated region
    $region22: #{tpu_custom_call.1} parent=1 // pred_check
      _
    $region23: #{tpu_custom_call.1} parent=1 // pred_check_branch
      %44 = sbr.rel (0) target = $region25
    $region24: #{tpu_custom_call.1} parent=1 // pred_region
      %45 = dma.done [#allocation3], 256
    $region25: #{tpu_custom_call.1} parent=1 // pred_fallthru
      _
    // Predicated region
    $region26: #{tpu_custom_call.1} parent=1 // pred_check
      _
    $region27: #{tpu_custom_call.1} parent=1 // pred_check_branch
      %47 = sbr.rel (0) target = $region29
    $region28: #{tpu_custom_call.1} parent=1 // pred_region
      %48 = dma.done [#allocation6], 2048
    $region29: #{tpu_custom_call.1} parent=1 // pred_fallthru
      _
    %v50 = vld [vmem:[#allocation2] sm:$0xff]
    %v51 = vld [vmem:[#allocation2 + $0x8] sm:$0xff]
    %v52 = vld [vmem:[#allocation5] sm:$0xf]
    %v53 = vld [vmem:[#allocation5 + $0x4] sm:$0xf]
    %v54 = vld [vmem:[#allocation5 + $0x8] sm:$0xf]
    %v55 = vld [vmem:[#allocation5 + $0xc] sm:$0xf]
    %v56 = vld [vmem:[#allocation5 + $0x10] sm:$0xf]
    %v57 = vld [vmem:[#allocation5 + $0x14] sm:$0xf]
    %v58 = vld [vmem:[#allocation5 + $0x18] sm:$0xf]
    %v59 = vld [vmem:[#allocation5 + $0x1c] sm:$0xf]
    %v60 = vld [vmem:[#allocation5 + $0x20] sm:$0xf]
    %v61 = vld [vmem:[#allocation5 + $0x24] sm:$0xf]
    %v62 = vld [vmem:[#allocation5 + $0x28] sm:$0xf]
    %v63 = vld [vmem:[#allocation5 + $0x2c] sm:$0xf]
    %v64 = vld [vmem:[#allocation5 + $0x30] sm:$0xf]
    %v65 = vld [vmem:[#allocation5 + $0x34] sm:$0xf]
    %v66 = vld [vmem:[#allocation5 + $0x38] sm:$0xf]
    %v67 = vld [vmem:[#allocation5 + $0x3c] sm:$0xf]
    %v68 = vld [vmem:[#allocation5 + $0x40] sm:$0xf]
    %v69 = vld [vmem:[#allocation5 + $0x44] sm:$0xf]
    %v70 = vld [vmem:[#allocation5 + $0x48] sm:$0xf]
    %v71 = vld [vmem:[#allocation5 + $0x4c] sm:$0xf]
    %v72 = vld [vmem:[#allocation5 + $0x50] sm:$0xf]
    %v73 = vld [vmem:[#allocation5 + $0x54] sm:$0xf]
    %v74 = vld [vmem:[#allocation5 + $0x58] sm:$0xf]
    %v75 = vld [vmem:[#allocation5 + $0x5c] sm:$0xf]
    %v76 = vld [vmem:[#allocation5 + $0x60] sm:$0xf]
    %v77 = vld [vmem:[#allocation5 + $0x64] sm:$0xf]
    %v78 = vld [vmem:[#allocation5 + $0x68] sm:$0xf]
    %v79 = vld [vmem:[#allocation5 + $0x6c] sm:$0xf]
    %v80 = vld [vmem:[#allocation5 + $0x70] sm:$0xf]
    %v81 = vld [vmem:[#allocation5 + $0x74] sm:$0xf]
    %v82 = vld [vmem:[#allocation5 + $0x78] sm:$0xf]
    %v83 = vld [vmem:[#allocation5 + $0x7c] sm:$0xf]
    %v84 = vld [vmem:[%s2] sm:$0x1]
    %v86 = vlaneseq
    %v87 = vshrl.u32 %v86, 7
    %v88 = vsub.s32 0, %v87
    %v89 = vrot.slane %v84, %v88
    %v93 = vunpack.c.l.b16 %v50
    %v94 = vunpack.c.h.b16 %v50
    %v95 = vunpack.c.l.b16 %v51
    %v96 = vunpack.c.h.b16 %v51
    %v97 = vpack.c.b16 %v95, %v93
    %v98 = vpack.c.b16 %v96, %v94
    %v133 = vunpack.c.l.b16 %v52
    %v134 = vunpack.c.l.b16 %v53
    %v135 = vunpack.c.l.b16 %v54
    %v136 = vunpack.c.l.b16 %v55
    %v137 = vunpack.c.l.b16 %v56
    %v138 = vunpack.c.l.b16 %v57
    %v139 = vunpack.c.l.b16 %v58
    %v140 = vunpack.c.l.b16 %v59
    %v141 = vunpack.c.l.b16 %v60
    %v142 = vunpack.c.l.b16 %v61
    %v143 = vunpack.c.l.b16 %v62
    %v144 = vunpack.c.l.b16 %v63
    %v145 = vunpack.c.l.b16 %v64
    %v146 = vunpack.c.l.b16 %v65
    %v147 = vunpack.c.l.b16 %v66
    %v148 = vunpack.c.l.b16 %v67
    %v149 = vunpack.c.l.b16 %v68
    %v150 = vunpack.c.l.b16 %v69
    %v151 = vunpack.c.l.b16 %v70
    %v152 = vunpack.c.l.b16 %v71
    %v153 = vunpack.c.l.b16 %v72
    %v154 = vunpack.c.l.b16 %v73
    %v155 = vunpack.c.l.b16 %v74
    %v156 = vunpack.c.l.b16 %v75
    %v157 = vunpack.c.l.b16 %v76
    %v158 = vunpack.c.l.b16 %v77
    %v159 = vunpack.c.l.b16 %v78
    %v160 = vunpack.c.l.b16 %v79
    %v161 = vunpack.c.l.b16 %v80
    %v162 = vunpack.c.l.b16 %v81
    %v163 = vunpack.c.l.b16 %v82
    %v164 = vunpack.c.l.b16 %v83
    %v165 = vpack.c.b16 %v134, %v133
    %v166 = vpack.c.b16 %v136, %v135
    %v167 = vpack.c.b16 %v138, %v137
    %v168 = vpack.c.b16 %v140, %v139
    %v169 = vpack.c.b16 %v142, %v141
    %v170 = vpack.c.b16 %v144, %v143
    %v171 = vpack.c.b16 %v146, %v145
    %v172 = vpack.c.b16 %v148, %v147
    %v173 = vpack.c.b16 %v150, %v149
    %v174 = vpack.c.b16 %v152, %v151
    %v175 = vpack.c.b16 %v154, %v153
    %v176 = vpack.c.b16 %v156, %v155
    %v177 = vpack.c.b16 %v158, %v157
    %v178 = vpack.c.b16 %v160, %v159
    %v179 = vpack.c.b16 %v162, %v161
    %v180 = vpack.c.b16 %v164, %v163
    %197 = vmatprep.subr.bf16.mxu0 0
    %198 = vmatpush1.bf16.msra.mxu0 %v165
    %199 = vmatprep.subr.bf16.mxu0 0
    %200 = vmatpush1.bf16.msra.mxu0 %v166
    %201 = vmatprep.subr.bf16.mxu0 0
    %202 = vmatpush1.bf16.msra.mxu0 %v167
    %203 = vmatprep.subr.bf16.mxu0 0
    %204 = vmatpush1.bf16.msra.mxu0 %v168
    %205 = vmatprep.subr.bf16.mxu0 0
    %206 = vmatpush1.bf16.msra.mxu0 %v169
    %207 = vmatprep.subr.bf16.mxu0 0
    %208 = vmatpush1.bf16.msra.mxu0 %v170
    %209 = vmatprep.subr.bf16.mxu0 0
    %210 = vmatpush1.bf16.msra.mxu0 %v171
    %211 = vmatprep.subr.bf16.mxu0 0
    %212 = vmatpush1.bf16.msra.mxu0 %v172
    %213 = vmatprep.subr.bf16.mxu0 0
    %214 = vmatpush1.bf16.msra.mxu0 %v173
    %215 = vmatprep.subr.bf16.mxu0 0
    %216 = vmatpush1.bf16.msra.mxu0 %v174
    %217 = vmatprep.subr.bf16.mxu0 0
    %218 = vmatpush1.bf16.msra.mxu0 %v175
    %219 = vmatprep.subr.bf16.mxu0 0
    %220 = vmatpush1.bf16.msra.mxu0 %v176
    %221 = vmatprep.subr.bf16.mxu0 0
    %222 = vmatpush1.bf16.msra.mxu0 %v177
    %223 = vmatprep.subr.bf16.mxu0 0
    %224 = vmatpush1.bf16.msra.mxu0 %v178
    %225 = vmatprep.subr.bf16.mxu0 0
    %226 = vmatpush1.bf16.msra.mxu0 %v179
    %227 = vmatprep.subr.bf16.mxu0 0
    %228 = vmatpush1.bf16.msra.mxu0 %v180
    %229 = vmatprep.mubr.bf16.mxu0 %v98
    %230 = vmatmul.mubr.bf16.gmra.mrb[0].mxu0 %v97
    %v231 = vpop.f32.mrb[0].mxu0
    %v232 = vadd.f32 %v89, %v231
    %v233 = vpop.f32.mrb[0].mxu0
    %v234 = vpop.f32.mrb[0].mxu0
    %v235 = vadd.f32 %v89, %v234
    %v236 = vpop.f32.mrb[0].mxu0
    %237 = vdwg.mxu0
    %238 = vadd.xlane.f32.xlu0 %v232
    %v239 = vpop.xlane.xlu0 %238
    %240 = vadd.xlane.f32.xlu0 %v235
    %v241 = vpop.xlane.xlu0 %240
    %v242 = vmul.f32 %v239, 0.03125
    %v243 = vmul.f32 %v241, 0.03125
    %v244 = vmul.f32 %v232, %v232
    %v245 = vmul.f32 %v235, %v235
    %246 = vadd.xlane.f32.xlu0 %v244
    %v247 = vpop.xlane.xlu0 %246
    %248 = vadd.xlane.f32.xlu0 %v245
    %v249 = vpop.xlane.xlu0 %248
    %v250 = vmul.f32 %v247, 0.03125
    %v251 = vmul.f32 %v249, 0.03125
    %v252 = vmul.f32 %v242, %v242
    %v253 = vmul.f32 %v243, %v243
    %v254 = vsub.f32 %v250, %v252
    %v255 = vsub.f32 %v251, %v253
    %v256 = vmax.f32 %v254, 0.0
    %v257 = vmax.f32 %v255, 0.0
    %v258 = vsub.f32 %v232, %v242
    %v259 = vsub.f32 %v235, %v243
    %v260 = vadd.f32 %v256, 1e-05
    %v261 = vadd.f32 %v257, 1e-05
    %v262 = vrsqrt.pop %v260
    %v263 = vrsqrt.pop %v261
    %v264 = vmul.f32 %v258, %v262
    %v265 = vmul.f32 %v259, %v263
    %v266 = vld [vmem:[%s3] sm:$0x1]
    %v268 = vlaneseq
    %v269 = vshrl.u32 %v268, 7
    %v270 = vsub.s32 0, %v269
    %v271 = vrot.slane %v266, %v270
    %v273 = vmul.f32 %v264, %v271
    %v274 = vmul.f32 %v265, %v271
    %v275 = vld [vmem:[%s4] sm:$0x1]
    %v277 = vlaneseq
    %v278 = vshrl.u32 %v277, 7
    %v279 = vsub.s32 0, %v278
    %v280 = vrot.slane %v275, %v279
    %v282 = vadd.f32 %v273, %v280
    %v283 = vadd.f32 %v274, %v280
    %284 = vst [vmem:[#allocation7] sm:$0xff] %v282
    %285 = vst [vmem:[#allocation7 + $0x8] sm:$0xff] %v283
    // Predicated region
    $region30: #{tpu_custom_call.1} parent=1 // pred_check
      _
    $region31: #{tpu_custom_call.1} parent=1 // pred_check_branch
      %287 = sbr.rel (0) target = $region33
    $region32: #{tpu_custom_call.1} parent=1 // pred_region
      %s289 = ssub.s32 256, 256
      %290 = vsyncadd [#allocation4], %s289
      %s291 = sshll.u32 [#allocation7], 4
      %s292 = int_to_ptr.vmem [resolvable:$true] %s291
      %297 = dma.vmem_to_hbm [thread:$0]  %s292, 256, %s5, [#allocation4], 128, 128, 8
    $region33: #{tpu_custom_call.1} parent=1 // pred_fallthru
      _
    // Predicated region
    $region34: #{tpu_custom_call.1} parent=1 // pred_check
      _
    $region35: #{tpu_custom_call.1} parent=1 // pred_check_branch
      %299 = sbr.rel (0) target = $region37
    $region36: #{tpu_custom_call.1} parent=1 // pred_region
      %300 = dma.done [#allocation4], 256
    $region37: #{tpu_custom_call.1} parent=1 // pred_fallthru
      _
    %301 = vsyncpa [#allocation3], 1
    %302 = vsyncpa [#allocation6], 1
    %303 = vsyncpa [#allocation4], 1

</llo_original>
